<compile_context>
chip_gen: v7x
topology: tpu7x:2x2x1
jax: 0.10.0
libtpu: 0.0.40
codegen_flags: <defaults>
</compile_context>

<pallas_src>
import functools

import jax
import jax.numpy as jnp
from jax import lax
from jax.experimental import pallas as pl
from jax.experimental.pallas import tpu as pltpu


def _round_up(x, m):
    return ((x + m - 1) // m) * m


def graphsage_kernel(self_ref, adj_ref, fw_ref, w_self_ref, w_cls_ref,
                     out_ref, acc_ref, *, d):
    k = pl.program_id(1)

    @pl.when(k == 0)
    def _init():
        acc_ref[...] = jnp.zeros_like(acc_ref)

    # Fused aggregation + degree: acc += adj_chunk @ [feat @ Wn^T | 1 | 0].
    # bf16 inputs, f32 accumulation on the MXU; the ones column makes the node
    # degree a free extra MXU output column (no XLU row-reduction).
    acc_ref[...] += jnp.dot(adj_ref[...], fw_ref[...],
                            preferred_element_type=jnp.float32)

    @pl.when(k == pl.num_programs(1) - 1)
    def _finalize():
        acc = acc_ref[...]                        # (tm, Dp) f32
        neigh_proj = acc[:, :d]                   # (tm, D): sum_j adj * (feat_j @ Wn^T)
        deg = acc[:, d:d + 1]                     # (tm, 1): node degree
        # EUP reciprocal; select-then-multiply guard keeps zero-degree (padded)
        # rows at exactly 0 -- the inf from 1/0 never reaches a multiply.
        inv_deg = jnp.where(deg > 0.0, pl.reciprocal(deg, approx=True), 0.0)
        h_neigh = neigh_proj * inv_deg            # scale applied on narrow (tm, D)

        # Encoder self-term + ReLU; contraction on the shared feature axis so
        # the transposed weight feeds the MXU with no XLU transpose.
        contract = (((1,), (1,)), ((), ()))
        h_self = lax.dot_general(self_ref[...], w_self_ref[...], contract,
                                 preferred_element_type=jnp.float32)
        embeds = jnp.maximum(h_self + h_neigh, 0.0)           # (tm, D)

        # Classifier: node-major, lane-dense (Cp = 128-padded classes).
        scores = lax.dot_general(embeds, w_cls_ref[...], contract,
                                 preferred_element_type=jnp.float32)
        out_ref[...] = scores.astype(out_ref.dtype)


def _choose_tiles(n, n_total, f, dp, cp, d, budget_bytes=48 << 20):
    """Pick (tm, tk) so the pipelined VMEM footprint stays under budget."""
    tm = min(512, _round_up(max(n, 1), 8))
    tk = min(1024, _round_up(max(n_total, 1), 128))

    def vmem_estimate(tm_, tk_):
        streamed = 2 * (tm_ * tk_ * 2      # adj chunk (bf16), double-buffered
                        + tk_ * dp * 2     # FW chunk (bf16), double-buffered
                        + tm_ * f * 4      # self feats (f32), double-buffered
                        + tm_ * cp * 4)    # output block (f32), double-buffered
        resident = (d * f + cp * d) * 4    # W_self + W_cls, single-buffered
        scratch = tm_ * dp * 4             # f32 accumulator
        return streamed + resident + scratch

    while vmem_estimate(tm, tk) > budget_bytes and (tm > 8 or tk > 128):
        if tk >= 256 and tk >= tm:
            tk = max(128, _round_up(tk // 2, 128))
        elif tm > 8:
            tm = max(8, _round_up(tm // 2, 8))
        else:
            break
    return tm, tk


def supervised_graphsage_forward(self_feats, adj, features, w_enc, w_cls,
                                 *, tm=None, tk=None):
    """Forward pass. Returns (N, num_classes) scores (== PyTorch forward())."""
    n, f = self_feats.shape
    n_total, f2 = features.shape
    d, two_f = w_enc.shape
    c, d2 = w_cls.shape
    assert f2 == f and two_f == 2 * f and d2 == d

    # Split encoder weight into [self | neighbor] halves (matches concat order).
    w_self = w_enc[:, :f]                                    # (D, F)
    w_neigh = w_enc[:, f:]                                   # (D, F)

    # Lane-padded widths.
    dp = _round_up(d + 1, 128)     # projected-neighbor cols + ones (degree) col
    cp = _round_up(c, 128)         # lane-dense classifier output

    if tm is None or tk is None:
        tm_a, tk_a = _choose_tiles(n, n_total, f, dp, cp, d)
        tm = tm if tm is not None else tm_a
        tk = tk if tk is not None else tk_a

    n_pad = _round_up(n, tm)
    nt_pad = _round_up(n_total, tk)

    # Hoist features @ W_neigh.T to one wrapper-side matmul; append a ones
    # column so degree = (adj @ FW1)[:, d]. Padded rows/cols stay zero, so they
    # contribute nothing to the aggregation or the degree.
    fw = features @ w_neigh.T                                # (n_total, D) f32
    fw1 = jnp.zeros((nt_pad, dp), jnp.float32)
    fw1 = fw1.at[:n_total, :d].set(fw)
    fw1 = fw1.at[:n_total, d].set(1.0)

    w_cls_p = jnp.zeros((cp, d), jnp.float32).at[:c, :].set(w_cls)

    self_p = jnp.pad(self_feats, ((0, n_pad - n), (0, 0)))
    adj_p = jnp.pad(adj, ((0, n_pad - n), (0, nt_pad - n_total)))

    # Stream the big operands as bf16 (0/1 adjacency stays exact); accumulation
    # stays f32 via preferred_element_type.
    adj_b = adj_p.astype(jnp.bfloat16)
    fw_b = fw1.astype(jnp.bfloat16)

    grid = (n_pad // tm, nt_pad // tk)

    # Advisory cost estimate for XLA's scheduler (FW chunks re-stream per node tile).
    flops = (2 * n_pad * nt_pad * dp
             + 2 * n_pad * f * d
             + 2 * n_pad * d * cp)
    bytes_accessed = (adj_b.size * 2
                      + grid[0] * fw_b.size * 2
                      + self_p.size * 4
                      + (w_self.size + w_cls_p.size) * 4
                      + n_pad * cp * 4)
    cost = pl.CostEstimate(flops=int(flops), transcendentals=0,
                           bytes_accessed=int(bytes_accessed))

    kernel = functools.partial(graphsage_kernel, d=d)

    out = pl.pallas_call(
        kernel,
        out_shape=jax.ShapeDtypeStruct((n_pad, cp), jnp.float32),
        grid_spec=pltpu.PrefetchScalarGridSpec(
            num_scalar_prefetch=0,
            grid=grid,
            in_specs=[
                # Self feats: constant across the reduction axis (no re-DMA per k).
                pl.BlockSpec((tm, f), lambda i, k: (i, 0)),
                # Adjacency chunk: streamed along both axes.
                pl.BlockSpec((tm, tk), lambda i, k: (i, k)),
                # Projected feature table chunk (+ ones column): streamed along k.
                pl.BlockSpec((tk, dp), lambda i, k: (k, 0)),
                # Resident weights: constant index, single-buffered to save VMEM.
                pl.BlockSpec((d, f), lambda i, k: (0, 0),
                             pipeline_mode=pl.Buffered(1)),
                pl.BlockSpec((cp, d), lambda i, k: (0, 0),
                             pipeline_mode=pl.Buffered(1)),
            ],
            out_specs=pl.BlockSpec((tm, cp), lambda i, k: (i, 0)),
            scratch_shapes=[pltpu.VMEM((tm, dp), jnp.float32)],
        ),
        compiler_params=pltpu.CompilerParams(
            dimension_semantics=("parallel", "arbitrary"),
            vmem_limit_bytes=56 << 20),
        cost_estimate=cost,
    )(self_p, adj_b, fw_b, w_self, w_cls_p)

    return out[:n, :c]


def xavier_uniform(key, shape):
    # torch.nn.init.xavier_uniform_ for a 2-D (fan_out, fan_in) weight.
    fan_out, fan_in = shape
    bound = (6.0 / (fan_in + fan_out)) ** 0.5
    return jax.random.uniform(key, shape, jnp.float32, -bound, bound)


def reference_forward(self_feats, adj, features, w_enc, w_cls):
    deg = adj.sum(axis=1, keepdims=True)
    neigh_mean = (adj @ features) / deg
    combined = jnp.concatenate([self_feats, neigh_mean], axis=1)   # (N, 2F)
    return (w_cls @ jnp.maximum(w_enc @ combined.T, 0.0)).T        # (N, C)


if __name__ == "__main__":
    num_classes = 7
    feat_dim = 16
    embed_dim = 32
    n_batch = 20      # |nodes| passed to forward()
    n_total = 260     # total nodes in the toy graph

    key = jax.random.PRNGKey(0)
    k_feat, k_adj, k_enc, k_cls = jax.random.split(key, 4)

    # Toy graph: node feature table + random neighbor structure (>=1 neighbor).
    features = jax.random.normal(k_feat, (n_total, feat_dim), jnp.float32)
    adj = (jax.random.uniform(k_adj, (n_batch, n_total)) < 0.1).astype(jnp.float32)
    adj = adj.at[jnp.arange(n_batch), jnp.arange(n_batch)].set(1.0)

    # Data-dependent self-feature gather stays as plain-JAX glue.
    nodes = jnp.arange(n_batch)
    self_feats = features[nodes]                              # (N, F)

    # Deterministic parameter init (xavier_uniform_, as in the module __init__s).
    w_enc = xavier_uniform(k_enc, (embed_dim, 2 * feat_dim))  # Encoder.weight
    w_cls = xavier_uniform(k_cls, (num_classes, embed_dim))   # SupervisedGraphSage.weight

    ref = reference_forward(self_feats, adj, features, w_enc, w_cls)

    # 1) Auto-chosen tiles (single grid step on this toy graph).
    fwd_auto = jax.jit(supervised_graphsage_forward)
    out_auto = jax.block_until_ready(
        fwd_auto(self_feats, adj, features, w_enc, w_cls))
    assert out_auto.shape == (n_batch, num_classes)
    assert out_auto.dtype == jnp.float32
    # bf16 streaming -> relaxed tolerance (f32 accumulation keeps error small).
    assert jnp.allclose(out_auto, ref, atol=5e-2, rtol=5e-2)

    # 2) Forced small tiles to exercise the multi-tile node axis and the
    #    n_total reduction axis (accumulator init/finalize path).
    fwd_tiled = jax.jit(functools.partial(supervised_graphsage_forward,
                                          tm=8, tk=128))
    out_tiled = jax.block_until_ready(
        fwd_tiled(self_feats, adj, features, w_enc, w_cls))
    assert out_tiled.shape == (n_batch, num_classes)
    assert jnp.allclose(out_tiled, ref, atol=5e-2, rtol=5e-2)

    print("KERNEL_OK")
</pallas_src>

<mosaic_0001>
module attributes {stable_mosaic.version = 11 : i64} {
  func.func @graphsage_kernel(%arg0: i32, %arg1: i32, %arg2: memref<24x16xf32, #tpu.memory_space<vmem>>, %arg3: memref<24x384xbf16, #tpu.memory_space<vmem>>, %arg4: memref<384x128xbf16, #tpu.memory_space<vmem>>, %arg5: memref<32x16xf32, #tpu.memory_space<vmem>>, %arg6: memref<128x32xf32, #tpu.memory_space<vmem>>, %arg7: memref<24x128xf32, #tpu.memory_space<vmem>>, %arg8: memref<24x128xf32, #tpu.memory_space<vmem>>) attributes {dimension_semantics = [#tpu.dimension_semantics<parallel>, #tpu.dimension_semantics<arbitrary>], iteration_bounds = array<i64: 1, 1>, scalar_prefetch = 0 : i64, scratch_operands = 1 : i64, tpu.core_type = #tpu.core_type<tc>, window_params = [{transform_indices = @transform_0, window_bounds = array<i64: 24, 16>}, {transform_indices = @transform_1, window_bounds = array<i64: 24, 384>}, {transform_indices = @transform_2, window_bounds = array<i64: 384, 128>}, {pipeline_mode = #tpu.pipeline_mode<synchronous>, transform_indices = @transform_3, window_bounds = array<i64: 32, 16>}, {pipeline_mode = #tpu.pipeline_mode<synchronous>, transform_indices = @transform_4, window_bounds = array<i64: 128, 32>}, {transform_indices = @transform_5, window_bounds = array<i64: 24, 128>}]} {
    %c0_i32 = arith.constant 0 : i32
    %0 = arith.cmpi eq, %arg1, %c0_i32 : i32
    %1 = arith.extui %0 : i1 to i32
    %c0_i32_0 = arith.constant 0 : i32
    %2 = arith.cmpi ne, %1, %c0_i32_0 : i32
    scf.if %2 {
      %cst_10 = arith.constant 0.000000e+00 : f32
      %12 = vector.broadcast %cst_10 : f32 to vector<24x128xf32>
      %c0_11 = arith.constant 0 : index
      %c0_12 = arith.constant 0 : index
      %13 = vector.load %arg8[%c0_11, %c0_12] : memref<24x128xf32, #tpu.memory_space<vmem>>, vector<24x128xf32>
      tpu.vector_store %arg8[%c0_11, %c0_12], %12 {strides = array<i32>} : memref<24x128xf32, #tpu.memory_space<vmem>>, vector<24x128xf32>,
    } else {
    }
    %c0 = arith.constant 0 : index
    %c0_1 = arith.constant 0 : index
    %3 = vector.load %arg8[%c0, %c0_1] : memref<24x128xf32, #tpu.memory_space<vmem>>, vector<24x128xf32>
    %c0_2 = arith.constant 0 : index
    %c0_3 = arith.constant 0 : index
    %4 = vector.load %arg3[%c0_2, %c0_3] : memref<24x384xbf16, #tpu.memory_space<vmem>>, vector<24x384xbf16>
    %c0_4 = arith.constant 0 : index
    %c0_5 = arith.constant 0 : index
    %5 = vector.load %arg4[%c0_4, %c0_5] : memref<384x128xbf16, #tpu.memory_space<vmem>>, vector<384x128xbf16>
    %cst = arith.constant dense<0.000000e+00> : vector<24x128xf32>
    %6 = tpu.matmul %4, %5, %cst {dimension_numbers = #tpu.dot_dimension_numbers<[1], [0], [0], [1], [0, 0, 1, 1], [], []>} : vector<24x384xbf16>, vector<384x128xbf16>, vector<24x128xf32> -> vector<24x128xf32>
    %7 = arith.addf %3, %6 : vector<24x128xf32>
    %c0_6 = arith.constant 0 : index
    %c0_7 = arith.constant 0 : index
    %8 = vector.load %arg8[%c0_6, %c0_7] : memref<24x128xf32, #tpu.memory_space<vmem>>, vector<24x128xf32>
    tpu.vector_store %arg8[%c0_6, %c0_7], %7 {strides = array<i32>} : memref<24x128xf32, #tpu.memory_space<vmem>>, vector<24x128xf32>,
    %c0_i32_8 = arith.constant 0 : i32
    %9 = arith.cmpi eq, %arg1, %c0_i32_8 : i32
    %10 = arith.extui %9 : i1 to i32
    %c0_i32_9 = arith.constant 0 : i32
    %11 = arith.cmpi ne, %10, %c0_i32_9 : i32
    scf.if %11 {
      %c0_10 = arith.constant 0 : index
      %c0_11 = arith.constant 0 : index
      %12 = vector.load %arg8[%c0_10, %c0_11] : memref<24x128xf32, #tpu.memory_space<vmem>>, vector<24x128xf32>
      %13 = vector.extract_strided_slice %12 {offsets = [0, 0], sizes = [24, 32], strides = [1, 1]} : vector<24x128xf32> to vector<24x32xf32>
      %14 = vector.extract_strided_slice %12 {offsets = [0, 32], sizes = [24, 1], strides = [1, 1]} : vector<24x128xf32> to vector<24x1xf32>
      %cst_12 = arith.constant 0.000000e+00 : f32
      %15 = vector.broadcast %cst_12 : f32 to vector<24x1xf32>
      %16 = arith.cmpf ogt, %14, %15 : vector<24x1xf32>
      %17 = tpu.reciprocal %14 {approx = true} : vector<24x1xf32> -> vector<24x1xf32>
      %cst_13 = arith.constant 0.000000e+00 : f32
      %18 = vector.broadcast %cst_13 : f32 to vector<24x1xf32>
      %19 = arith.select %16, %17, %18 : vector<24x1xi1>, vector<24x1xf32>
      %20 = vector.broadcast %19 : vector<24x1xf32> to vector<24x32xf32>
      %21 = arith.mulf %13, %20 : vector<24x32xf32>
      %c0_14 = arith.constant 0 : index
      %c0_15 = arith.constant 0 : index
      %22 = vector.load %arg2[%c0_14, %c0_15] : memref<24x16xf32, #tpu.memory_space<vmem>>, vector<24x16xf32>
      %c0_16 = arith.constant 0 : index
      %c0_17 = arith.constant 0 : index
      %23 = vector.load %arg5[%c0_16, %c0_17] : memref<32x16xf32, #tpu.memory_space<vmem>>, vector<32x16xf32>
      %cst_18 = arith.constant dense<0.000000e+00> : vector<24x32xf32>
      %24 = tpu.matmul %22, %23, %cst_18 {dimension_numbers = #tpu.dot_dimension_numbers<[1], [1], [0], [0], [0, 0, 1, 0], [], []>} : vector<24x16xf32>, vector<32x16xf32>, vector<24x32xf32> -> vector<24x32xf32>
      %25 = arith.addf %24, %21 : vector<24x32xf32>
      %cst_19 = arith.constant 0.000000e+00 : f32
      %26 = vector.broadcast %cst_19 : f32 to vector<24x32xf32>
      %27 = arith.maximumf %25, %26 : vector<24x32xf32>
      %c0_20 = arith.constant 0 : index
      %c0_21 = arith.constant 0 : index
      %28 = vector.load %arg6[%c0_20, %c0_21] : memref<128x32xf32, #tpu.memory_space<vmem>>, vector<128x32xf32>
      %cst_22 = arith.constant dense<0.000000e+00> : vector<24x128xf32>
      %29 = tpu.matmul %27, %28, %cst_22 {dimension_numbers = #tpu.dot_dimension_numbers<[1], [1], [0], [0], [0, 0, 1, 0], [], []>} : vector<24x32xf32>, vector<128x32xf32>, vector<24x128xf32> -> vector<24x128xf32>
      %c0_23 = arith.constant 0 : index
      %c0_24 = arith.constant 0 : index
      %30 = vector.load %arg7[%c0_23, %c0_24] : memref<24x128xf32, #tpu.memory_space<vmem>>, vector<24x128xf32>
      tpu.vector_store %arg7[%c0_23, %c0_24], %29 {strides = array<i32>} : memref<24x128xf32, #tpu.memory_space<vmem>>, vector<24x128xf32>,
    } else {
    }
    return
  }
  func.func @transform_0(%arg0: i32, %arg1: i32) -> (i32, i32) {
    %c0_i32 = arith.constant 0 : i32
    %c0_i32_0 = arith.constant 0 : i32
    return %arg0, %c0_i32 : i32, i32
  }
  func.func @transform_1(%arg0: i32, %arg1: i32) -> (i32, i32) {
    %c0_i32 = arith.constant 0 : i32
    return %arg0, %arg1 : i32, i32
  }
  func.func @transform_2(%arg0: i32, %arg1: i32) -> (i32, i32) {
    %c0_i32 = arith.constant 0 : i32
    %c0_i32_0 = arith.constant 0 : i32
    return %arg1, %c0_i32 : i32, i32
  }
  func.func @transform_3(%arg0: i32, %arg1: i32) -> (i32, i32) {
    %c0_i32 = arith.constant 0 : i32
    %c0_i32_0 = arith.constant 0 : i32
    %c0_i32_1 = arith.constant 0 : i32
    return %c0_i32, %c0_i32_0 : i32, i32
  }
  func.func @transform_4(%arg0: i32, %arg1: i32) -> (i32, i32) {
    %c0_i32 = arith.constant 0 : i32
    %c0_i32_0 = arith.constant 0 : i32
    %c0_i32_1 = arith.constant 0 : i32
    return %c0_i32, %c0_i32_0 : i32, i32
  }
  func.func @transform_5(%arg0: i32, %arg1: i32) -> (i32, i32) {
    %c0_i32 = arith.constant 0 : i32
    %c0_i32_0 = arith.constant 0 : i32
    return %arg0, %c0_i32 : i32, i32
  }
}

</mosaic_0001>

<llo_original>
// kernel: supervised_graphsage_forward.1
$region0: #{supervised_graphsage_forward.1}
  #allocation0 [shape = 'u32[]', space=smem, size = 0x4, offset = 0x4, fixed_abs, tag = 'smem constant byte address 0x4 - core index']
  #allocation1 [shape = 'u32[144,128]{1,0:T(1,128)}', space=vmem, size = 0x12000, scoped, tag = 'internal scratch']
  #allocation2 [shape = 'f32[24,128]{1,0:T(8,128)}', space=vmem, size = 0x3000, scoped, tag = 'scratch operand']
  %s0 = inlined_call_operand.vmem [shape: f32[24,16], index: 0, kind: input, shape index: {}]
  %s1 = inlined_call_operand.vmem [shape: bf16[24,384], index: 1, kind: input, shape index: {}]
  %s2 = inlined_call_operand.vmem [shape: bf16[384,128], index: 2, kind: input, shape index: {}]
  %s3 = inlined_call_operand.vmem [shape: f32[32,16], index: 3, kind: input, shape index: {}]
  %s4 = inlined_call_operand.vmem [shape: f32[128,32], index: 4, kind: input, shape index: {}]
  %s5 = inlined_call_operand.vmem [shape: f32[24,128], index: 5, kind: output, shape index: {}]
  %s6 = sld [smem:[#allocation0]]
  $region38: #{supervised_graphsage_forward.1} parent=0
    _
  %s8 = ssub.s32 1, %s6
  %s9 = scalar_select 0, %s8, %s6
  // Predicated region
  $region2: #{supervised_graphsage_forward.1} parent=0 // pred_check
    _
  $region3: #{supervised_graphsage_forward.1} parent=0 // pred_check_branch
    %11 = sbr.rel (0) target = $region5
  $region4: #{supervised_graphsage_forward.1} parent=0 // pred_region
    _
  $region5: #{supervised_graphsage_forward.1} parent=0 // pred_fallthru
    _
  // Predicated region
  $region6: #{supervised_graphsage_forward.1} parent=0 // pred_check
    _
  $region7: #{supervised_graphsage_forward.1} parent=0 // pred_check_branch
    %13 = sbr.rel (0) target = $region9
  $region8: #{supervised_graphsage_forward.1} parent=0 // pred_region
    _
  $region9: #{supervised_graphsage_forward.1} parent=0 // pred_fallthru
    _
  // Predicated region
  $region10: #{supervised_graphsage_forward.1} parent=0 // pred_check
    _
  $region11: #{supervised_graphsage_forward.1} parent=0 // pred_check_branch
    %15 = sbr.rel (0) target = $region13
  $region12: #{supervised_graphsage_forward.1} parent=0 // pred_region
    _
  $region13: #{supervised_graphsage_forward.1} parent=0 // pred_fallthru
    _
  // Predicated region
  $region14: #{supervised_graphsage_forward.1} parent=0 // pred_check
    _
  $region15: #{supervised_graphsage_forward.1} parent=0 // pred_check_branch
    %17 = sbr.rel (0) target = $region17
  $region16: #{supervised_graphsage_forward.1} parent=0 // pred_region
    _
  $region17: #{supervised_graphsage_forward.1} parent=0 // pred_fallthru
    _
  // Predicated region
  $region18: #{supervised_graphsage_forward.1} parent=0 // pred_check
    _
  $region19: #{supervised_graphsage_forward.1} parent=0 // pred_check_branch
    %19 = sbr.rel (0) target = $region21
  $region20: #{supervised_graphsage_forward.1} parent=0 // pred_region
    _
  $region21: #{supervised_graphsage_forward.1} parent=0 // pred_fallthru
    _
  %p21 = scmp.eq.s32.totalorder 0, 0
  // Predicated region
  $region22: #{supervised_graphsage_forward.1} parent=0 // pred_check
    %p22 = pneg %p21
  $region23: #{supervised_graphsage_forward.1} parent=0 // pred_check_branch
    %24 = sbr.rel (%p22) target = $region25
  $region24: #{supervised_graphsage_forward.1} parent=0 // pred_region
    %25 = vst [vmem:[#allocation2] sm:$0xff] 0.0
    %26 = vst [vmem:[#allocation2 + $0x8] sm:$0xff] 0.0
    %27 = vst [vmem:[#allocation2 + $0x10] sm:$0xff] 0.0
  $region25: #{supervised_graphsage_forward.1} parent=0 // pred_fallthru
    _
  %v28 = vld [vmem:[#allocation2] sm:$0xff]
  %v29 = vld [vmem:[#allocation2 + $0x8] sm:$0xff]
  %v30 = vld [vmem:[#allocation2 + $0x10] sm:$0xff]
  %v31 = vld [vmem:[%s1] sm:$0xff]
  %v32 = vld [vmem:[%s1 + $0x8] sm:$0xf]
  %v33 = vld [vmem:[%s1 + $0xc] sm:$0xff]
  %v34 = vld [vmem:[%s1 + $0x14] sm:$0xf]
  %v35 = vld [vmem:[%s1 + $0x18] sm:$0xff]
  %v36 = vld [vmem:[%s1 + $0x20] sm:$0xf]
  %v37 = vld [vmem:[%s2] sm:$0xf]
  %v38 = vld [vmem:[%s2 + $0x4] sm:$0xf]
  %v39 = vld [vmem:[%s2 + $0x8] sm:$0xf]
  %v40 = vld [vmem:[%s2 + $0xc] sm:$0xf]
  %v41 = vld [vmem:[%s2 + $0x10] sm:$0xf]
  %v42 = vld [vmem:[%s2 + $0x14] sm:$0xf]
  %v43 = vld [vmem:[%s2 + $0x18] sm:$0xf]
  %v44 = vld [vmem:[%s2 + $0x1c] sm:$0xf]
  %v45 = vld [vmem:[%s2 + $0x20] sm:$0xf]
  %v46 = vld [vmem:[%s2 + $0x24] sm:$0xf]
  %v47 = vld [vmem:[%s2 + $0x28] sm:$0xf]
  %v48 = vld [vmem:[%s2 + $0x2c] sm:$0xf]
  %v49 = vld [vmem:[%s2 + $0x30] sm:$0xf]
  %v50 = vld [vmem:[%s2 + $0x34] sm:$0xf]
  %v51 = vld [vmem:[%s2 + $0x38] sm:$0xf]
  %v52 = vld [vmem:[%s2 + $0x3c] sm:$0xf]
  %v53 = vld [vmem:[%s2 + $0x40] sm:$0xf]
  %v54 = vld [vmem:[%s2 + $0x44] sm:$0xf]
  %v55 = vld [vmem:[%s2 + $0x48] sm:$0xf]
  %v56 = vld [vmem:[%s2 + $0x4c] sm:$0xf]
  %v57 = vld [vmem:[%s2 + $0x50] sm:$0xf]
  %v58 = vld [vmem:[%s2 + $0x54] sm:$0xf]
  %v59 = vld [vmem:[%s2 + $0x58] sm:$0xf]
  %v60 = vld [vmem:[%s2 + $0x5c] sm:$0xf]
  %v61 = vld [vmem:[%s2 + $0x60] sm:$0xf]
  %v62 = vld [vmem:[%s2 + $0x64] sm:$0xf]
  %v63 = vld [vmem:[%s2 + $0x68] sm:$0xf]
  %v64 = vld [vmem:[%s2 + $0x6c] sm:$0xf]
  %v65 = vld [vmem:[%s2 + $0x70] sm:$0xf]
  %v66 = vld [vmem:[%s2 + $0x74] sm:$0xf]
  %v67 = vld [vmem:[%s2 + $0x78] sm:$0xf]
  %v68 = vld [vmem:[%s2 + $0x7c] sm:$0xf]
  %v69 = vld [vmem:[%s2 + $0x80] sm:$0xf]
  %v70 = vld [vmem:[%s2 + $0x84] sm:$0xf]
  %v71 = vld [vmem:[%s2 + $0x88] sm:$0xf]
  %v72 = vld [vmem:[%s2 + $0x8c] sm:$0xf]
  %v73 = vld [vmem:[%s2 + $0x90] sm:$0xf]
  %v74 = vld [vmem:[%s2 + $0x94] sm:$0xf]
  %v75 = vld [vmem:[%s2 + $0x98] sm:$0xf]
  %v76 = vld [vmem:[%s2 + $0x9c] sm:$0xf]
  %v77 = vld [vmem:[%s2 + $0xa0] sm:$0xf]
  %v78 = vld [vmem:[%s2 + $0xa4] sm:$0xf]
  %v79 = vld [vmem:[%s2 + $0xa8] sm:$0xf]
  %v80 = vld [vmem:[%s2 + $0xac] sm:$0xf]
  %v81 = vld [vmem:[%s2 + $0xb0] sm:$0xf]
  %v82 = vld [vmem:[%s2 + $0xb4] sm:$0xf]
  %v83 = vld [vmem:[%s2 + $0xb8] sm:$0xf]
  %v84 = vld [vmem:[%s2 + $0xbc] sm:$0xf]
  %v91 = vunpack.c.l.b16 %v31
  %v92 = vunpack.c.h.b16 %v31
  %v93 = vunpack.c.l.b16 %v32
  %v94 = vunpack.c.l.b16 %v33
  %v95 = vunpack.c.h.b16 %v33
  %v96 = vunpack.c.l.b16 %v34
  %v97 = vunpack.c.l.b16 %v35
  %v98 = vunpack.c.h.b16 %v35
  %v99 = vunpack.c.l.b16 %v36
  %v100 = vpack.c.b16 %v94, %v91
  %v101 = vpack.c.b16 %v95, %v92
  %v102 = vpack.c.b16 %v96, %v93
  %v103 = vpack.c.b16 %v97, %v97
  %v104 = vpack.c.b16 %v98, %v98
  %v105 = vpack.c.b16 %v99, %v99
  %v160 = vunpack.c.l.b16 %v37
  %v161 = vunpack.c.l.b16 %v38
  %v162 = vunpack.c.l.b16 %v39
  %v163 = vunpack.c.l.b16 %v40
  %v164 = vunpack.c.l.b16 %v41
  %v165 = vunpack.c.l.b16 %v42
  %v166 = vunpack.c.l.b16 %v43
  %v167 = vunpack.c.l.b16 %v44
  %v168 = vunpack.c.l.b16 %v45
  %v169 = vunpack.c.l.b16 %v46
  %v170 = vunpack.c.l.b16 %v47
  %v171 = vunpack.c.l.b16 %v48
  %v172 = vunpack.c.l.b16 %v49
  %v173 = vunpack.c.l.b16 %v50
  %v174 = vunpack.c.l.b16 %v51
  %v175 = vunpack.c.l.b16 %v52
  %v176 = vunpack.c.l.b16 %v53
  %v177 = vunpack.c.l.b16 %v54
  %v178 = vunpack.c.l.b16 %v55
  %v179 = vunpack.c.l.b16 %v56
  %v180 = vunpack.c.l.b16 %v57
  %v181 = vunpack.c.l.b16 %v58
  %v182 = vunpack.c.l.b16 %v59
  %v183 = vunpack.c.l.b16 %v60
  %v184 = vunpack.c.l.b16 %v61
  %v185 = vunpack.c.l.b16 %v62
  %v186 = vunpack.c.l.b16 %v63
  %v187 = vunpack.c.l.b16 %v64
  %v188 = vunpack.c.l.b16 %v65
  %v189 = vunpack.c.l.b16 %v66
  %v190 = vunpack.c.l.b16 %v67
  %v191 = vunpack.c.l.b16 %v68
  %v192 = vunpack.c.l.b16 %v69
  %v193 = vunpack.c.l.b16 %v70
  %v194 = vunpack.c.l.b16 %v71
  %v195 = vunpack.c.l.b16 %v72
  %v196 = vunpack.c.l.b16 %v73
  %v197 = vunpack.c.l.b16 %v74
  %v198 = vunpack.c.l.b16 %v75
  %v199 = vunpack.c.l.b16 %v76
  %v200 = vunpack.c.l.b16 %v77
  %v201 = vunpack.c.l.b16 %v78
  %v202 = vunpack.c.l.b16 %v79
  %v203 = vunpack.c.l.b16 %v80
  %v204 = vunpack.c.l.b16 %v81
  %v205 = vunpack.c.l.b16 %v82
  %v206 = vunpack.c.l.b16 %v83
  %v207 = vunpack.c.l.b16 %v84
  %v208 = vpack.c.b16 %v161, %v160
  %v209 = vpack.c.b16 %v163, %v162
  %v210 = vpack.c.b16 %v165, %v164
  %v211 = vpack.c.b16 %v167, %v166
  %v212 = vpack.c.b16 %v169, %v168
  %v213 = vpack.c.b16 %v171, %v170
  %v214 = vpack.c.b16 %v173, %v172
  %v215 = vpack.c.b16 %v175, %v174
  %v216 = vpack.c.b16 %v177, %v176
  %v217 = vpack.c.b16 %v179, %v178
  %v218 = vpack.c.b16 %v181, %v180
  %v219 = vpack.c.b16 %v183, %v182
  %v220 = vpack.c.b16 %v185, %v184
  %v221 = vpack.c.b16 %v187, %v186
  %v222 = vpack.c.b16 %v189, %v188
  %v223 = vpack.c.b16 %v191, %v190
  %v224 = vpack.c.b16 %v193, %v192
  %v225 = vpack.c.b16 %v195, %v194
  %v226 = vpack.c.b16 %v197, %v196
  %v227 = vpack.c.b16 %v199, %v198
  %v228 = vpack.c.b16 %v201, %v200
  %v229 = vpack.c.b16 %v203, %v202
  %v230 = vpack.c.b16 %v205, %v204
  %v231 = vpack.c.b16 %v207, %v206
  %256 = vmatprep.subr.bf16.mxu0 0
  %257 = vmatpush1.bf16.msra.mxu0 %v208
  %258 = vmatprep.subr.bf16.mxu0 0
  %259 = vmatpush1.bf16.msra.mxu0 %v209
  %260 = vmatprep.subr.bf16.mxu0 0
  %261 = vmatpush1.bf16.msra.mxu0 %v210
  %262 = vmatprep.subr.bf16.mxu0 0
  %263 = vmatpush1.bf16.msra.mxu0 %v211
  %264 = vmatprep.subr.bf16.mxu0 0
  %265 = vmatpush1.bf16.msra.mxu0 %v212
  %266 = vmatprep.subr.bf16.mxu0 0
  %267 = vmatpush1.bf16.msra.mxu0 %v213
  %268 = vmatprep.subr.bf16.mxu0 0
  %269 = vmatpush1.bf16.msra.mxu0 %v214
  %270 = vmatprep.subr.bf16.mxu0 0
  %271 = vmatpush1.bf16.msra.mxu0 %v215
  %272 = vmatprep.subr.bf16.mxu0 0
  %273 = vmatpush1.bf16.msra.mxu0 %v216
  %274 = vmatprep.subr.bf16.mxu0 0
  %275 = vmatpush1.bf16.msra.mxu0 %v217
  %276 = vmatprep.subr.bf16.mxu0 0
  %277 = vmatpush1.bf16.msra.mxu0 %v218
  %278 = vmatprep.subr.bf16.mxu0 0
  %279 = vmatpush1.bf16.msra.mxu0 %v219
  %280 = vmatprep.subr.bf16.mxu0 0
  %281 = vmatpush1.bf16.msra.mxu0 %v220
  %282 = vmatprep.subr.bf16.mxu0 0
  %283 = vmatpush1.bf16.msra.mxu0 %v221
  %284 = vmatprep.subr.bf16.mxu0 0
  %285 = vmatpush1.bf16.msra.mxu0 %v222
  %286 = vmatprep.subr.bf16.mxu0 0
  %287 = vmatpush1.bf16.msra.mxu0 %v223
  %288 = vmatprep.mubr.bf16.mxu0 %v101
  %289 = vmatmul.mubr.bf16.gmra.mrb[0].mxu0 %v100
  %v290 = vpop.f32.mrb[0].mxu0
  %v291 = vadd.f32 0.0, %v290
  %v292 = vpop.f32.mrb[0].mxu0
  %v293 = vpop.f32.mrb[0].mxu0
  %v294 = vadd.f32 0.0, %v293
  %v295 = vpop.f32.mrb[0].mxu0
  %296 = vmatprep.mubr.bf16.mxu0 %v104
  %297 = vmatmul.mubr.bf16.gmra.mrb[0].mxu0 %v103
  %v298 = vpop.f32.mrb[0].mxu0
  %v299 = vadd.f32 0.0, %v298
  %v300 = vpop.f32.mrb[0].mxu0
  %v301 = vpop.f32.mrb[0].mxu0
  %v302 = vpop.f32.mrb[0].mxu0
  %303 = vdwg.mxu0
  %304 = vmatprep.subr.bf16.mxu0 0
  %305 = vmatpush1.bf16.msra.mxu0 %v224
  %306 = vmatprep.subr.bf16.mxu0 0
  %307 = vmatpush1.bf16.msra.mxu0 %v225
  %308 = vmatprep.subr.bf16.mxu0 0
  %309 = vmatpush1.bf16.msra.mxu0 %v226
  %310 = vmatprep.subr.bf16.mxu0 0
  %311 = vmatpush1.bf16.msra.mxu0 %v227
  %312 = vmatprep.subr.bf16.mxu0 0
  %313 = vmatpush1.bf16.msra.mxu0 %v228
  %314 = vmatprep.subr.bf16.mxu0 0
  %315 = vmatpush1.bf16.msra.mxu0 %v229
  %316 = vmatprep.subr.bf16.mxu0 0
  %317 = vmatpush1.bf16.msra.mxu0 %v230
  %318 = vmatprep.subr.bf16.mxu0 0
  %319 = vmatpush1.bf16.msra.mxu0 %v231
  %320 = vmatprep.subr.bf16.mxu0 0
  %321 = vmatpush1.bf16.msra.mxu0 0
  %322 = vmatprep.subr.bf16.mxu0 0
  %323 = vmatpush1.bf16.msra.mxu0 0
  %324 = vmatprep.subr.bf16.mxu0 0
  %325 = vmatpush1.bf16.msra.mxu0 0
  %326 = vmatprep.subr.bf16.mxu0 0
  %327 = vmatpush1.bf16.msra.mxu0 0
  %328 = vmatprep.subr.bf16.mxu0 0
  %329 = vmatpush1.bf16.msra.mxu0 0
  %330 = vmatprep.subr.bf16.mxu0 0
  %331 = vmatpush1.bf16.msra.mxu0 0
  %332 = vmatprep.subr.bf16.mxu0 0
  %333 = vmatpush1.bf16.msra.mxu0 0
  %334 = vmatprep.subr.bf16.mxu0 0
  %335 = vmatpush1.bf16.msra.mxu0 0
  %336 = vmatprep.mubr.bf16.mxu0 0
  %337 = vmatmul.mubr.bf16.gmra.mrb[0].mxu0 %v102
  %v338 = vpop.f32.mrb[0].mxu0
  %v339 = vadd.f32 %v291, %v338
  %v340 = vpop.f32.mrb[0].mxu0
  %v341 = vpop.f32.mrb[0].mxu0
  %v342 = vadd.f32 %v294, %v341
  %v343 = vpop.f32.mrb[0].mxu0
  %344 = vmatprep.mubr.bf16.mxu0 0
  %345 = vmatmul.mubr.bf16.gmra.mrb[0].mxu0 %v105
  %v346 = vpop.f32.mrb[0].mxu0
  %v347 = vadd.f32 %v299, %v346
  %v348 = vpop.f32.mrb[0].mxu0
  %v349 = vpop.f32.mrb[0].mxu0
  %v350 = vpop.f32.mrb[0].mxu0
  %351 = vdwg.mxu0
  %v352 = vadd.f32 %v28, %v339
  %v353 = vadd.f32 %v29, %v342
  %v354 = vadd.f32 %v30, %v347
  %355 = vst [vmem:[#allocation2] sm:$0xff] %v352
  %356 = vst [vmem:[#allocation2 + $0x8] sm:$0xff] %v353
  %357 = vst [vmem:[#allocation2 + $0x10] sm:$0xff] %v354
  // Predicated region
  $region26: #{supervised_graphsage_forward.1} parent=0 // pred_check
    %p358 = pneg %p21
  $region27: #{supervised_graphsage_forward.1} parent=0 // pred_check_branch
    %360 = sbr.rel (%p358) target = $region29
  $region28: #{supervised_graphsage_forward.1} parent=0 // pred_region
    %v361 = vld [vmem:[#allocation2] sm:$0xff]
    %v362 = vld [vmem:[#allocation2 + $0x8] sm:$0xff]
    %v363 = vld [vmem:[#allocation2 + $0x10] sm:$0xff]
    %vm364 = vcmp.gt.f32.partialorder %v361, 0.0
    %vm365 = vcmp.gt.f32.partialorder %v362, 0.0
    %vm366 = vcmp.gt.f32.partialorder %v363, 0.0
    %v367 = vrcp.pop %v361
    %v368 = vrcp.pop %v362
    %v369 = vrcp.pop %v363
    %v370 = vsel %vm364, %v367, 0.0
    %v371 = vsel %vm365, %v368, 0.0
    %v372 = vsel %vm366, %v369, 0.0
    %374 = vset.pattern.permute.xlu0 32
    %375 = vperm.xlu0 %374, %v370
    %v376 = vpop.permute.xlu0 %375
    %379 = vset.pattern.permute.xlu0 32
    %380 = vperm.xlu0 %379, %v371
    %v381 = vpop.permute.xlu0 %380
    %384 = vset.pattern.permute.xlu0 32
    %385 = vperm.xlu0 %384, %v372
    %v386 = vpop.permute.xlu0 %385
    %v388 = vmul.f32 %v361, %v376
    %v389 = vmul.f32 %v362, %v381
    %v390 = vmul.f32 %v363, %v386
    %v391 = vld [vmem:[%s0] sm:$0xff]
    %v392 = vld [vmem:[%s0 + $0x8] sm:$0xff]
    %v393 = vld [vmem:[%s0 + $0x10] sm:$0xff]
    %v394 = vld [vmem:[%s3] sm:$0xff]
    %v395 = vld [vmem:[%s3 + $0x8] sm:$0xff]
    %v396 = vld [vmem:[%s3 + $0x10] sm:$0xff]
    %v397 = vld [vmem:[%s3 + $0x18] sm:$0xff]
    %vm398 = vcmask 130048
    %v400 = vsel %vm398, %v391, 0
    %v403 = vsel %vm398, %v392, 0
    %v406 = vsel %vm398, %v393, 0
    %v409 = vsel %vm398, %v394, 0
    %v412 = vsel %vm398, %v395, 0
    %v415 = vsel %vm398, %v396, 0
    %v418 = vsel %vm398, %v397, 0
    %420 = vmatprep.subr.mxu0 0.0
    %421 = vmatpush1.xpose.msra.mxu0 %v409
    %422 = vmatprep.subr.mxu0 0.0
    %423 = vmatpush1.xpose.msra.mxu0 %v412
    %424 = vmatprep.subr.mxu0 0.0
    %425 = vmatpush1.xpose.msra.mxu0 %v415
    %426 = vmatprep.subr.mxu0 0.0
    %427 = vmatpush1.xpose.msra.mxu0 %v418
    %428 = vmatprep.subr.mxu0 0.0
    %429 = vmatpush1.xpose.msra.mxu0 0.0
    %430 = vmatprep.subr.mxu0 0.0
    %431 = vmatpush1.xpose.msra.mxu0 0.0
    %432 = vmatprep.subr.mxu0 0.0
    %433 = vmatpush1.xpose.msra.mxu0 0.0
    %434 = vmatprep.subr.mxu0 0.0
    %435 = vmatpush1.xpose.msra.mxu0 0.0
    %436 = vmatprep.subr.mxu0 0.0
    %437 = vmatpush1.xpose.msra.mxu0 0.0
    %438 = vmatprep.subr.mxu0 0.0
    %439 = vmatpush1.xpose.msra.mxu0 0.0
    %440 = vmatprep.subr.mxu0 0.0
    %441 = vmatpush1.xpose.msra.mxu0 0.0
    %442 = vmatprep.subr.mxu0 0.0
    %443 = vmatpush1.xpose.msra.mxu0 0.0
    %444 = vmatprep.subr.mxu0 0.0
    %445 = vmatpush1.xpose.msra.mxu0 0.0
    %446 = vmatprep.subr.mxu0 0.0
    %447 = vmatpush1.xpose.msra.mxu0 0.0
    %448 = vmatprep.subr.mxu0 0.0
    %449 = vmatpush1.xpose.msra.mxu0 0.0
    %450 = vmatprep.subr.mxu0 0.0
    %451 = vmatpush1.xpose.msra.mxu0 0.0
    %452 = vmatprep.subr.mxu0 0.0
    %453 = vmatpush1.xpose.msra.mxu0 0.0
    %454 = vmatprep.subr.mxu0 0.0
    %455 = vmatpush1.xpose.msra.mxu0 0.0
    %456 = vmatprep.subr.mxu0 0.0
    %457 = vmatpush1.xpose.msra.mxu0 0.0
    %458 = vmatprep.subr.mxu0 0.0
    %459 = vmatpush1.xpose.msra.mxu0 0.0
    %460 = vmatprep.subr.mxu0 0.0
    %461 = vmatpush1.xpose.msra.mxu0 0.0
    %462 = vmatprep.subr.mxu0 0.0
    %463 = vmatpush1.xpose.msra.mxu0 0.0
    %464 = vmatprep.subr.mxu0 0.0
    %465 = vmatpush1.xpose.msra.mxu0 0.0
    %466 = vmatprep.subr.mxu0 0.0
    %467 = vmatpush1.xpose.msra.mxu0 0.0
    %468 = vmatprep.subr.mxu0 0.0
    %469 = vmatpush1.xpose.msra.mxu0 0.0
    %470 = vmatprep.subr.mxu0 0.0
    %471 = vmatpush1.xpose.msra.mxu0 0.0
    %472 = vmatprep.subr.mxu0 0.0
    %473 = vmatpush1.xpose.msra.mxu0 0.0
    %474 = vmatprep.subr.mxu0 0.0
    %475 = vmatpush1.xpose.msra.mxu0 0.0
    %476 = vmatprep.subr.mxu0 0.0
    %477 = vmatpush1.xpose.msra.mxu0 0.0
    %478 = vmatprep.subr.mxu0 0.0
    %479 = vmatpush1.xpose.msra.mxu0 0.0
    %480 = vmatprep.subr.mxu0 0.0
    %481 = vmatpush1.xpose.msra.mxu0 0.0
    %482 = vmatprep.subr.mxu0 0.0
    %483 = vmatpush1.xpose.msra.mxu0 0.0
    %484 = vmatprep.mubr.f32.mxu0 0.0
    %485 = vmatmul.mubr.f32.gmra.mrb[0].mxu0 %v400
    %v486 = vpop.f32.mrb[0].mxu0
    %v487 = vadd.f32 %v388, %v486
    %v488 = vpop.f32.mrb[0].mxu0
    %489 = vmatprep.mubr.f32.mxu0 0.0
    %490 = vmatmul.mubr.f32.gmra.mrb[0].mxu0 %v403
    %v491 = vpop.f32.mrb[0].mxu0
    %v492 = vadd.f32 %v389, %v491
    %v493 = vpop.f32.mrb[0].mxu0
    %494 = vmatprep.mubr.f32.mxu0 0.0
    %495 = vmatmul.mubr.f32.gmra.mrb[0].mxu0 %v406
    %v496 = vpop.f32.mrb[0].mxu0
    %v497 = vadd.f32 %v390, %v496
    %v498 = vpop.f32.mrb[0].mxu0
    %499 = vdwg.mxu0
    %v500 = vmax.f32 %v487, 0.0
    %v501 = vmax.f32 %v492, 0.0
    %v502 = vmax.f32 %v497, 0.0
    %v503 = vld [vmem:[%s4] sm:$0xff]
    %v504 = vld [vmem:[%s4 + $0x8] sm:$0xff]
    %v505 = vld [vmem:[%s4 + $0x10] sm:$0xff]
    %v506 = vld [vmem:[%s4 + $0x18] sm:$0xff]
    %v507 = vld [vmem:[%s4 + $0x20] sm:$0xff]
    %v508 = vld [vmem:[%s4 + $0x28] sm:$0xff]
    %v509 = vld [vmem:[%s4 + $0x30] sm:$0xff]
    %v510 = vld [vmem:[%s4 + $0x38] sm:$0xff]
    %v511 = vld [vmem:[%s4 + $0x40] sm:$0xff]
    %v512 = vld [vmem:[%s4 + $0x48] sm:$0xff]
    %v513 = vld [vmem:[%s4 + $0x50] sm:$0xff]
    %v514 = vld [vmem:[%s4 + $0x58] sm:$0xff]
    %v515 = vld [vmem:[%s4 + $0x60] sm:$0xff]
    %v516 = vld [vmem:[%s4 + $0x68] sm:$0xff]
    %v517 = vld [vmem:[%s4 + $0x70] sm:$0xff]
    %v518 = vld [vmem:[%s4 + $0x78] sm:$0xff]
    %vm519 = vcmask 261120
    %v521 = vsel %vm519, %v500, 0
    %v524 = vsel %vm519, %v501, 0
    %v527 = vsel %vm519, %v502, 0
    %v530 = vsel %vm519, %v503, 0
    %v533 = vsel %vm519, %v504, 0
    %v536 = vsel %vm519, %v505, 0
    %v539 = vsel %vm519, %v506, 0
    %v542 = vsel %vm519, %v507, 0
    %v545 = vsel %vm519, %v508, 0
    %v548 = vsel %vm519, %v509, 0
    %v551 = vsel %vm519, %v510, 0
    %v554 = vsel %vm519, %v511, 0
    %v557 = vsel %vm519, %v512, 0
    %v560 = vsel %vm519, %v513, 0
    %v563 = vsel %vm519, %v514, 0
    %v566 = vsel %vm519, %v515, 0
    %v569 = vsel %vm519, %v516, 0
    %v572 = vsel %vm519, %v517, 0
    %v575 = vsel %vm519, %v518, 0
    %577 = vmatprep.subr.mxu0 0.0
    %578 = vmatpush1.xpose.msra.mxu0 %v530
    %579 = vmatprep.subr.mxu0 0.0
    %580 = vmatpush1.xpose.msra.mxu0 %v533
    %581 = vmatprep.subr.mxu0 0.0
    %582 = vmatpush1.xpose.msra.mxu0 %v536
    %583 = vmatprep.subr.mxu0 0.0
    %584 = vmatpush1.xpose.msra.mxu0 %v539
    %585 = vmatprep.subr.mxu0 0.0
    %586 = vmatpush1.xpose.msra.mxu0 %v542
    %587 = vmatprep.subr.mxu0 0.0
    %588 = vmatpush1.xpose.msra.mxu0 %v545
    %589 = vmatprep.subr.mxu0 0.0
    %590 = vmatpush1.xpose.msra.mxu0 %v548
    %591 = vmatprep.subr.mxu0 0.0
    %592 = vmatpush1.xpose.msra.mxu0 %v551
    %593 = vmatprep.subr.mxu0 0.0
    %594 = vmatpush1.xpose.msra.mxu0 %v554
    %595 = vmatprep.subr.mxu0 0.0
    %596 = vmatpush1.xpose.msra.mxu0 %v557
    %597 = vmatprep.subr.mxu0 0.0
    %598 = vmatpush1.xpose.msra.mxu0 %v560
    %599 = vmatprep.subr.mxu0 0.0
    %600 = vmatpush1.xpose.msra.mxu0 %v563
    %601 = vmatprep.subr.mxu0 0.0
    %602 = vmatpush1.xpose.msra.mxu0 %v566
    %603 = vmatprep.subr.mxu0 0.0
    %604 = vmatpush1.xpose.msra.mxu0 %v569
    %605 = vmatprep.subr.mxu0 0.0
    %606 = vmatpush1.xpose.msra.mxu0 %v572
    %607 = vmatprep.subr.mxu0 0.0
    %608 = vmatpush1.xpose.msra.mxu0 %v575
    %609 = vmatprep.subr.mxu0 0.0
    %610 = vmatpush1.xpose.msra.mxu0 0.0
    %611 = vmatprep.subr.mxu0 0.0
    %612 = vmatpush1.xpose.msra.mxu0 0.0
    %613 = vmatprep.subr.mxu0 0.0
    %614 = vmatpush1.xpose.msra.mxu0 0.0
    %615 = vmatprep.subr.mxu0 0.0
    %616 = vmatpush1.xpose.msra.mxu0 0.0
    %617 = vmatprep.subr.mxu0 0.0
    %618 = vmatpush1.xpose.msra.mxu0 0.0
    %619 = vmatprep.subr.mxu0 0.0
    %620 = vmatpush1.xpose.msra.mxu0 0.0
    %621 = vmatprep.subr.mxu0 0.0
    %622 = vmatpush1.xpose.msra.mxu0 0.0
    %623 = vmatprep.subr.mxu0 0.0
    %624 = vmatpush1.xpose.msra.mxu0 0.0
    %625 = vmatprep.subr.mxu0 0.0
    %626 = vmatpush1.xpose.msra.mxu0 0.0
    %627 = vmatprep.subr.mxu0 0.0
    %628 = vmatpush1.xpose.msra.mxu0 0.0
    %629 = vmatprep.subr.mxu0 0.0
    %630 = vmatpush1.xpose.msra.mxu0 0.0
    %631 = vmatprep.subr.mxu0 0.0
    %632 = vmatpush1.xpose.msra.mxu0 0.0
    %633 = vmatprep.subr.mxu0 0.0
    %634 = vmatpush1.xpose.msra.mxu0 0.0
    %635 = vmatprep.subr.mxu0 0.0
    %636 = vmatpush1.xpose.msra.mxu0 0.0
    %637 = vmatprep.subr.mxu0 0.0
    %638 = vmatpush1.xpose.msra.mxu0 0.0
    %639 = vmatprep.subr.mxu0 0.0
    %640 = vmatpush1.xpose.msra.mxu0 0.0
    %641 = vmatprep.mubr.f32.mxu0 0.0
    %642 = vmatmul.mubr.f32.gmra.mrb[0].mxu0 %v521
    %v643 = vpop.f32.mrb[0].mxu0
    %v644 = vadd.f32 0.0, %v643
    %v645 = vpop.f32.mrb[0].mxu0
    %646 = vmatprep.mubr.f32.mxu0 0.0
    %647 = vmatmul.mubr.f32.gmra.mrb[0].mxu0 %v524
    %v648 = vpop.f32.mrb[0].mxu0
    %v649 = vadd.f32 0.0, %v648
    %v650 = vpop.f32.mrb[0].mxu0
    %651 = vmatprep.mubr.f32.mxu0 0.0
    %652 = vmatmul.mubr.f32.gmra.mrb[0].mxu0 %v527
    %v653 = vpop.f32.mrb[0].mxu0
    %v654 = vadd.f32 0.0, %v653
    %v655 = vpop.f32.mrb[0].mxu0
    %656 = vdwg.mxu0
    %657 = vst [vmem:[%s5] sm:$0xff] %v644
    %658 = vst [vmem:[%s5 + $0x8] sm:$0xff] %v649
    %659 = vst [vmem:[%s5 + $0x10] sm:$0xff] %v654
  $region29: #{supervised_graphsage_forward.1} parent=0 // pred_fallthru
    _
  // Predicated region
  $region30: #{supervised_graphsage_forward.1} parent=0 // pred_check
    _
  $region31: #{supervised_graphsage_forward.1} parent=0 // pred_check_branch
    %661 = sbr.rel (0) target = $region33
  $region32: #{supervised_graphsage_forward.1} parent=0 // pred_region
    _
  $region33: #{supervised_graphsage_forward.1} parent=0 // pred_fallthru
    _
  // Predicated region
  $region34: #{supervised_graphsage_forward.1} parent=0 // pred_check
    _
  $region35: #{supervised_graphsage_forward.1} parent=0 // pred_check_branch
    %663 = sbr.rel (0) target = $region37
  $region36: #{supervised_graphsage_forward.1} parent=0 // pred_region
    _
  $region37: #{supervised_graphsage_forward.1} parent=0 // pred_fallthru
    _

</llo_original>
